<compile_context>
chip_gen: v7x
topology: tpu7x:2x2x1
jax: 0.10.0
libtpu: 0.0.40
codegen_flags: <defaults>
</compile_context>

<pallas_src>
import jax
import jax.numpy as jnp
from jax.experimental import pallas as pl
from jax.experimental.pallas import tpu as pltpu


def _round_up(x, m):
    return (x + m - 1) // m * m


def linear_relu_kernel(x_ref, w_ref, b_ref, o_ref, acc_ref):
    # x_ref: (tm, tk)  w_ref: (tk, tn)  b_ref: (1, tn)  o_ref: (tm, tn)
    k = pl.program_id(2)

    @pl.when(k == 0)
    def _():
        acc_ref[...] = jnp.zeros_like(acc_ref)

    acc_ref[...] += jnp.dot(
        x_ref[...], w_ref[...], preferred_element_type=jnp.float32
    )

    @pl.when(k == pl.num_programs(2) - 1)
    def _():
        y = acc_ref[...] + b_ref[...]              # bias broadcast over rows (f32)
        o_ref[...] = jnp.maximum(y, 0.0).astype(o_ref.dtype)


def vanilla_linear(x, w, b, *, tile_m=512, tile_n=1024, tile_k=1024):
    """ReLU(x @ w + b).  x: (M, K); w: (K, N) (pre-transposed vs torch); b: (N,)."""
    M, K = x.shape
    K2, N = w.shape
    assert K == K2 and b.shape == (N,)
    out_dtype = x.dtype

    # ---- tile selection -------------------------------------------------
    # M / N: if the whole dim fits in one tile, use the full dim as the block
    # size (block dim == full array dim is always legal).  This keeps the X
    # row-panel fully resident at small batch (W streamed once) and avoids any
    # jnp.pad copy along M / N; boundary blocks of the cdiv grid are masked on
    # store.  Large dims use MXU-friendly 256-multiple tiles (defaults).
    tm = M if M <= tile_m else tile_m
    tn = N if N <= tile_n else tile_n

    # K (reduction axis): must be exactly covered -- garbage in a partial
    # boundary block would corrupt the accumulator, so zero-pad only K, and
    # only when actually needed.
    if K <= tile_k:
        tk = K
        Kp = K
    else:
        tk = tile_k
        Kp = _round_up(K, tk)
        if Kp != K:
            x = jnp.pad(x, ((0, 0), (0, Kp - K)))
            w = jnp.pad(w, ((0, Kp - K), (0, 0)))

    b2 = b.reshape(1, N)

    grid = (pl.cdiv(M, tm), pl.cdiv(N, tn), Kp // tk)   # K last = reduction axis

    # ---- VMEM budget ----------------------------------------------------
    # double-buffered x / w / bias inputs + double-buffered output + f32 acc.
    vmem_need = 4 * (2 * (tm * tk + tk * tn + tn) + 2 * tm * tn + tm * tn)
    try:
        vmem_cap = int(pltpu.get_tpu_info().vmem_capacity_bytes)
    except Exception:
        vmem_cap = 64 << 20                    # conservative: v7x per-TC size
    vmem_limit = max(16 << 20, min((vmem_cap * 3) // 4, vmem_need + (8 << 20)))

    cost = pl.CostEstimate(
        flops=2 * M * N * K,
        transcendentals=0,
        bytes_accessed=(M * K + K * N + N + M * N) * x.dtype.itemsize,
    )

    return pl.pallas_call(
        linear_relu_kernel,
        out_shape=jax.ShapeDtypeStruct((M, N), out_dtype),
        grid_spec=pltpu.PrefetchScalarGridSpec(
            num_scalar_prefetch=0,
            grid=grid,
            in_specs=[
                pl.BlockSpec((tm, tk), lambda i, j, k: (i, k)),   # x tile
                pl.BlockSpec((tk, tn), lambda i, j, k: (k, j)),   # weight tile
                pl.BlockSpec((1, tn), lambda i, j, k: (0, j)),    # bias tile
            ],
            out_specs=pl.BlockSpec((tm, tn), lambda i, j, k: (i, j)),
            scratch_shapes=[pltpu.VMEM((tm, tn), jnp.float32)],
        ),
        compiler_params=pltpu.CompilerParams(
            dimension_semantics=("parallel", "parallel", "arbitrary"),
            vmem_limit_bytes=vmem_limit,
        ),
        cost_estimate=cost,
    )(x, w, b2)


if __name__ == "__main__":
    key = jax.random.PRNGKey(0)
    kx, kw, kb = jax.random.split(key, 3)

    # Shapes implied by the module forward: 2-D input (batch, in_features).
    batch, in_features, out_features = 8, 32, 32
    x = jax.random.normal(kx, (batch, in_features), dtype=jnp.float32)
    # PyTorch nn.Linear weight is (out, in); we keep it pre-transposed: (in, out)
    w = jax.random.normal(kw, (in_features, out_features), dtype=jnp.float32) * 0.1
    b = jax.random.normal(kb, (out_features,), dtype=jnp.float32) * 0.1

    # TODO(synk): nn.Dropout(p=0) / eval-mode dropout is the identity; no kernel needed.

    y = vanilla_linear(x, w, b)
    jax.block_until_ready(y)
    y_ref = jnp.maximum(x @ w + b, 0.0)
    assert jnp.allclose(y, y_ref, atol=1e-5, rtol=1e-5), "mismatch vs reference (small)"

    # Second check: exercises the multi-block (M, N, K) grid, the K-only
    # zero-padding (K=200 with tk=128), the K-reduction accumulator, and the
    # masked M / N boundary blocks (M=50 with tm=16, N=300 with tn=128).
    key2 = jax.random.PRNGKey(1)
    kx2, kw2, kb2 = jax.random.split(key2, 3)
    M2, K2, N2 = 50, 200, 300
    x2 = jax.random.normal(kx2, (M2, K2), dtype=jnp.float32)
    w2 = jax.random.normal(kw2, (K2, N2), dtype=jnp.float32) * 0.05
    b2 = jax.random.normal(kb2, (N2,), dtype=jnp.float32) * 0.05
    y2 = vanilla_linear(x2, w2, b2, tile_m=16, tile_n=128, tile_k=128)
    jax.block_until_ready(y2)
    y2_ref = jnp.maximum(x2 @ w2 + b2, 0.0)
    assert jnp.allclose(y2, y2_ref, atol=1e-3, rtol=1e-3), "mismatch vs reference (tiled)"

    print("KERNEL_OK")
</pallas_src>

<mosaic_0001>
module attributes {stable_mosaic.version = 11 : i64} {
  func.func @linear_relu_kernel(%arg0: i32, %arg1: i32, %arg2: i32, %arg3: memref<8x32xf32, #tpu.memory_space<vmem>>, %arg4: memref<32x32xf32, #tpu.memory_space<vmem>>, %arg5: memref<1x32xf32, #tpu.memory_space<vmem>>, %arg6: memref<8x32xf32, #tpu.memory_space<vmem>>, %arg7: memref<8x32xf32, #tpu.memory_space<vmem>>) attributes {dimension_semantics = [#tpu.dimension_semantics<parallel>, #tpu.dimension_semantics<parallel>, #tpu.dimension_semantics<arbitrary>], iteration_bounds = array<i64: 1, 1, 1>, scalar_prefetch = 0 : i64, scratch_operands = 1 : i64, tpu.core_type = #tpu.core_type<tc>, window_params = [{transform_indices = @transform_0, window_bounds = array<i64: 8, 32>}, {transform_indices = @transform_1, window_bounds = array<i64: 32, 32>}, {transform_indices = @transform_2, window_bounds = array<i64: 1, 32>}, {transform_indices = @transform_3, window_bounds = array<i64: 8, 32>}]} {
    %c0_i32 = arith.constant 0 : i32
    %0 = arith.cmpi eq, %arg2, %c0_i32 : i32
    %1 = arith.extui %0 : i1 to i32
    %c0_i32_0 = arith.constant 0 : i32
    %2 = arith.cmpi ne, %1, %c0_i32_0 : i32
    scf.if %2 {
      %cst_10 = arith.constant 0.000000e+00 : f32
      %12 = vector.broadcast %cst_10 : f32 to vector<8x32xf32>
      %c0_11 = arith.constant 0 : index
      %c0_12 = arith.constant 0 : index
      %13 = vector.load %arg7[%c0_11, %c0_12] : memref<8x32xf32, #tpu.memory_space<vmem>>, vector<8x32xf32>
      tpu.vector_store %arg7[%c0_11, %c0_12], %12 {strides = array<i32>} : memref<8x32xf32, #tpu.memory_space<vmem>>, vector<8x32xf32>,
    } else {
    }
    %c0 = arith.constant 0 : index
    %c0_1 = arith.constant 0 : index
    %3 = vector.load %arg7[%c0, %c0_1] : memref<8x32xf32, #tpu.memory_space<vmem>>, vector<8x32xf32>
    %c0_2 = arith.constant 0 : index
    %c0_3 = arith.constant 0 : index
    %4 = vector.load %arg3[%c0_2, %c0_3] : memref<8x32xf32, #tpu.memory_space<vmem>>, vector<8x32xf32>
    %c0_4 = arith.constant 0 : index
    %c0_5 = arith.constant 0 : index
    %5 = vector.load %arg4[%c0_4, %c0_5] : memref<32x32xf32, #tpu.memory_space<vmem>>, vector<32x32xf32>
    %cst = arith.constant dense<0.000000e+00> : vector<8x32xf32>
    %6 = tpu.matmul %4, %5, %cst {dimension_numbers = #tpu.dot_dimension_numbers<[1], [0], [0], [1], [0, 0, 1, 1], [], []>} : vector<8x32xf32>, vector<32x32xf32>, vector<8x32xf32> -> vector<8x32xf32>
    %7 = arith.addf %3, %6 : vector<8x32xf32>
    %c0_6 = arith.constant 0 : index
    %c0_7 = arith.constant 0 : index
    %8 = vector.load %arg7[%c0_6, %c0_7] : memref<8x32xf32, #tpu.memory_space<vmem>>, vector<8x32xf32>
    tpu.vector_store %arg7[%c0_6, %c0_7], %7 {strides = array<i32>} : memref<8x32xf32, #tpu.memory_space<vmem>>, vector<8x32xf32>,
    %c0_i32_8 = arith.constant 0 : i32
    %9 = arith.cmpi eq, %arg2, %c0_i32_8 : i32
    %10 = arith.extui %9 : i1 to i32
    %c0_i32_9 = arith.constant 0 : i32
    %11 = arith.cmpi ne, %10, %c0_i32_9 : i32
    scf.if %11 {
      %c0_10 = arith.constant 0 : index
      %c0_11 = arith.constant 0 : index
      %12 = vector.load %arg7[%c0_10, %c0_11] : memref<8x32xf32, #tpu.memory_space<vmem>>, vector<8x32xf32>
      %c0_12 = arith.constant 0 : index
      %c0_13 = arith.constant 0 : index
      %13 = vector.load %arg5[%c0_12, %c0_13] : memref<1x32xf32, #tpu.memory_space<vmem>>, vector<1x32xf32>
      %14 = vector.broadcast %13 : vector<1x32xf32> to vector<8x32xf32>
      %15 = arith.addf %12, %14 : vector<8x32xf32>
      %cst_14 = arith.constant 0.000000e+00 : f32
      %16 = vector.broadcast %cst_14 : f32 to vector<8x32xf32>
      %17 = arith.maximumf %15, %16 : vector<8x32xf32>
      %c0_15 = arith.constant 0 : index
      %c0_16 = arith.constant 0 : index
      %18 = vector.load %arg6[%c0_15, %c0_16] : memref<8x32xf32, #tpu.memory_space<vmem>>, vector<8x32xf32>
      tpu.vector_store %arg6[%c0_15, %c0_16], %17 {strides = array<i32>} : memref<8x32xf32, #tpu.memory_space<vmem>>, vector<8x32xf32>,
    } else {
    }
    return
  }
  func.func @transform_0(%arg0: i32, %arg1: i32, %arg2: i32) -> (i32, i32) {
    %c0_i32 = arith.constant 0 : i32
    return %arg0, %arg2 : i32, i32
  }
  func.func @transform_1(%arg0: i32, %arg1: i32, %arg2: i32) -> (i32, i32) {
    %c0_i32 = arith.constant 0 : i32
    return %arg2, %arg1 : i32, i32
  }
  func.func @transform_2(%arg0: i32, %arg1: i32, %arg2: i32) -> (i32, i32) {
    %c0_i32 = arith.constant 0 : i32
    %c0_i32_0 = arith.constant 0 : i32
    return %c0_i32, %arg1 : i32, i32
  }
  func.func @transform_3(%arg0: i32, %arg1: i32, %arg2: i32) -> (i32, i32) {
    %c0_i32 = arith.constant 0 : i32
    return %arg0, %arg1 : i32, i32
  }
}

</mosaic_0001>

<llo_original>
// kernel: tpu_custom_call.1
$region0: #{tpu_custom_call.1}
  #allocation0 [shape = 'u32[]', space=smem, size = 0x4, offset = 0x4, fixed_abs, tag = 'smem constant byte address 0x4 - core index']
  #allocation1 [shape = 'u32[144,128]{1,0:T(1,128)}', space=vmem, size = 0x12000, scoped, tag = 'internal scratch']
  #allocation2 [shape = 'f32[8,32]{1,0:T(8,128)}', space=vmem, size = 0x1000, scoped, tag = 'scratch operand']
  %s0 = inlined_call_operand.hbm [shape: f32[8,32], index: 0, kind: input, shape index: {}]
  %s1 = inlined_call_operand.hbm [shape: f32[32,32], index: 1, kind: input, shape index: {}]
  %s2 = inlined_call_operand.vmem [shape: f32[1,32], index: 2, kind: input, shape index: {}]
  %s3 = inlined_call_operand.hbm [shape: f32[8,32], index: 3, kind: output, shape index: {}]
  %s4 = sld [smem:[#allocation0]]
  $region38: #{tpu_custom_call.1} parent=0
    _
  %s6 = ssub.s32 1, %s4
  %s7 = scalar_select 0, %s6, %s4
  $region1: #{tpu_custom_call.1} parent=0
    #allocation3 [shape = 'u8[4096]{0}', space=vmem, size = 0x1000, scoped, tag = 'input window, operand 0, single buffered']
    #allocation4 [shape = 's32[1]{0}', space=sflag, size = 0x4, scoped, tag = 'scoped memory for tpu_custom_call.1']
    #allocation5 [shape = 's32[1]{0}', space=sflag, size = 0x4, scoped, tag = 'scoped memory for tpu_custom_call.1']
    #allocation6 [shape = 'u8[16384]{0}', space=vmem, size = 0x4000, scoped, tag = 'input window, operand 1, single buffered']
    #allocation7 [shape = 's32[1]{0}', space=sflag, size = 0x4, scoped, tag = 'scoped memory for tpu_custom_call.1']
    #allocation8 [shape = 'u8[4096]{0}', space=vmem, size = 0x1000, scoped, tag = 'output window, operand 0, single buffered']
    %8 = vsyncpa [#allocation4], 0
    %9 = vsyncpa [#allocation7], 0
    %10 = vsyncpa [#allocation5], 0
    // Predicated region
    $region2: #{tpu_custom_call.1} parent=1 // pred_check
      _
    $region3: #{tpu_custom_call.1} parent=1 // pred_check_branch
      %12 = sbr.rel (0) target = $region5
    $region4: #{tpu_custom_call.1} parent=1 // pred_region
      %s14 = ssub.s32 128, 128
      %15 = vsyncadd [#allocation4], %s14
      %s17 = sshll.u32 [#allocation3], 4
      %s18 = int_to_ptr.vmem [resolvable:$true] %s17
      %20 = dma.hbm_to_vmem [thread:$0]  %s0, 128, %s18, [#allocation4]
    $region5: #{tpu_custom_call.1} parent=1 // pred_fallthru
      _
    // Predicated region
    $region6: #{tpu_custom_call.1} parent=1 // pred_check
      _
    $region7: #{tpu_custom_call.1} parent=1 // pred_check_branch
      %22 = sbr.rel (0) target = $region9
    $region8: #{tpu_custom_call.1} parent=1 // pred_region
      %s24 = ssub.s32 512, 512
      %25 = vsyncadd [#allocation7], %s24
      %s26 = sshll.u32 [#allocation6], 4
      %s27 = int_to_ptr.vmem [resolvable:$true] %s26
      %32 = dma.hbm_to_vmem [thread:$0]  %s1, 512, %s27, [#allocation7], 128, 128, 8
    $region9: #{tpu_custom_call.1} parent=1 // pred_fallthru
      _
    // Predicated region
    $region10: #{tpu_custom_call.1} parent=1 // pred_check
      _
    $region11: #{tpu_custom_call.1} parent=1 // pred_check_branch
      %34 = sbr.rel (0) target = $region13
    $region12: #{tpu_custom_call.1} parent=1 // pred_region
      _
    $region13: #{tpu_custom_call.1} parent=1 // pred_fallthru
      _
    // Predicated region
    $region14: #{tpu_custom_call.1} parent=1 // pred_check
      _
    $region15: #{tpu_custom_call.1} parent=1 // pred_check_branch
      %36 = sbr.rel (0) target = $region17
    $region16: #{tpu_custom_call.1} parent=1 // pred_region
      %37 = dma.done [#allocation4], 128
    $region17: #{tpu_custom_call.1} parent=1 // pred_fallthru
      _
    // Predicated region
    $region18: #{tpu_custom_call.1} parent=1 // pred_check
      _
    $region19: #{tpu_custom_call.1} parent=1 // pred_check_branch
      %39 = sbr.rel (0) target = $region21
    $region20: #{tpu_custom_call.1} parent=1 // pred_region
      %40 = dma.done [#allocation7], 512
    $region21: #{tpu_custom_call.1} parent=1 // pred_fallthru
      _
    %p41 = scmp.eq.s32.totalorder 0, 0
    // Predicated region
    $region22: #{tpu_custom_call.1} parent=1 // pred_check
      %p42 = pneg %p41
    $region23: #{tpu_custom_call.1} parent=1 // pred_check_branch
      %44 = sbr.rel (%p42) target = $region25
    $region24: #{tpu_custom_call.1} parent=1 // pred_region
      %vm45 = vcmask 261120
      %46 = vst.msk [vmem:[#allocation2] sm:$0xff] %vm45, 0.0
    $region25: #{tpu_custom_call.1} parent=1 // pred_fallthru
      _
    %v47 = vld [vmem:[#allocation2] sm:$0xff]
    %v48 = vld [vmem:[#allocation3] sm:$0xff]
    %v49 = vld [vmem:[#allocation6] sm:$0xff]
    %v50 = vld [vmem:[#allocation6 + $0x8] sm:$0xff]
    %v51 = vld [vmem:[#allocation6 + $0x10] sm:$0xff]
    %v52 = vld [vmem:[#allocation6 + $0x18] sm:$0xff]
    %vm53 = vcmask 261120
    %v55 = vsel %vm53, %v48, 0
    %57 = vmatprep.subr.mxu0 0.0
    %58 = vmatpush1.msra.mxu0 %v49
    %59 = vmatprep.subr.mxu0 0.0
    %60 = vmatpush1.msra.mxu0 %v50
    %61 = vmatprep.subr.mxu0 0.0
    %62 = vmatpush1.msra.mxu0 %v51
    %63 = vmatprep.subr.mxu0 0.0
    %64 = vmatpush1.msra.mxu0 %v52
    %65 = vmatprep.subr.mxu0 0.0
    %66 = vmatpush1.msra.mxu0 0.0
    %67 = vmatprep.subr.mxu0 0.0
    %68 = vmatpush1.msra.mxu0 0.0
    %69 = vmatprep.subr.mxu0 0.0
    %70 = vmatpush1.msra.mxu0 0.0
    %71 = vmatprep.subr.mxu0 0.0
    %72 = vmatpush1.msra.mxu0 0.0
    %73 = vmatprep.subr.mxu0 0.0
    %74 = vmatpush1.msra.mxu0 0.0
    %75 = vmatprep.subr.mxu0 0.0
    %76 = vmatpush1.msra.mxu0 0.0
    %77 = vmatprep.subr.mxu0 0.0
    %78 = vmatpush1.msra.mxu0 0.0
    %79 = vmatprep.subr.mxu0 0.0
    %80 = vmatpush1.msra.mxu0 0.0
    %81 = vmatprep.subr.mxu0 0.0
    %82 = vmatpush1.msra.mxu0 0.0
    %83 = vmatprep.subr.mxu0 0.0
    %84 = vmatpush1.msra.mxu0 0.0
    %85 = vmatprep.subr.mxu0 0.0
    %86 = vmatpush1.msra.mxu0 0.0
    %87 = vmatprep.subr.mxu0 0.0
    %88 = vmatpush1.msra.mxu0 0.0
    %89 = vmatprep.subr.mxu0 0.0
    %90 = vmatpush1.msra.mxu0 0.0
    %91 = vmatprep.subr.mxu0 0.0
    %92 = vmatpush1.msra.mxu0 0.0
    %93 = vmatprep.subr.mxu0 0.0
    %94 = vmatpush1.msra.mxu0 0.0
    %95 = vmatprep.subr.mxu0 0.0
    %96 = vmatpush1.msra.mxu0 0.0
    %97 = vmatprep.subr.mxu0 0.0
    %98 = vmatpush1.msra.mxu0 0.0
    %99 = vmatprep.subr.mxu0 0.0
    %100 = vmatpush1.msra.mxu0 0.0
    %101 = vmatprep.subr.mxu0 0.0
    %102 = vmatpush1.msra.mxu0 0.0
    %103 = vmatprep.subr.mxu0 0.0
    %104 = vmatpush1.msra.mxu0 0.0
    %105 = vmatprep.subr.mxu0 0.0
    %106 = vmatpush1.msra.mxu0 0.0
    %107 = vmatprep.subr.mxu0 0.0
    %108 = vmatpush1.msra.mxu0 0.0
    %109 = vmatprep.subr.mxu0 0.0
    %110 = vmatpush1.msra.mxu0 0.0
    %111 = vmatprep.subr.mxu0 0.0
    %112 = vmatpush1.msra.mxu0 0.0
    %113 = vmatprep.subr.mxu0 0.0
    %114 = vmatpush1.msra.mxu0 0.0
    %115 = vmatprep.subr.mxu0 0.0
    %116 = vmatpush1.msra.mxu0 0.0
    %117 = vmatprep.subr.mxu0 0.0
    %118 = vmatpush1.msra.mxu0 0.0
    %119 = vmatprep.subr.mxu0 0.0
    %120 = vmatpush1.msra.mxu0 0.0
    %121 = vmatprep.mubr.f32.mxu0 0.0
    %122 = vmatmul.mubr.f32.gmra.mrb[0].mxu0 %v55
    %v123 = vpop.f32.mrb[0].mxu0
    %v124 = vadd.f32 0.0, %v123
    %v125 = vpop.f32.mrb[0].mxu0
    %126 = vdwg.mxu0
    %v127 = vadd.f32 %v47, %v124
    %128 = vst.msk [vmem:[#allocation2] sm:$0xff] %vm53, %v127
    // Predicated region
    $region26: #{tpu_custom_call.1} parent=1 // pred_check
      %p129 = pneg %p41
    $region27: #{tpu_custom_call.1} parent=1 // pred_check_branch
      %131 = sbr.rel (%p129) target = $region29
    $region28: #{tpu_custom_call.1} parent=1 // pred_region
      %v132 = vld [vmem:[#allocation2] sm:$0xff]
      %v133 = vld [vmem:[%s2] sm:$0x1]
      %v135 = vlaneseq
      %v136 = vshrl.u32 %v135, 7
      %v137 = vsub.s32 0, %v136
      %v138 = vrot.slane %v133, %v137
      %v140 = vadd.f32 %v132, %v138
      %v141 = vmax.f32 %v140, 0.0
      %142 = vst.msk [vmem:[#allocation8] sm:$0xff] %vm53, %v141
    $region29: #{tpu_custom_call.1} parent=1 // pred_fallthru
      _
    // Predicated region
    $region30: #{tpu_custom_call.1} parent=1 // pred_check
      _
    $region31: #{tpu_custom_call.1} parent=1 // pred_check_branch
      %144 = sbr.rel (0) target = $region33
    $region32: #{tpu_custom_call.1} parent=1 // pred_region
      %s146 = ssub.s32 128, 128
      %147 = vsyncadd [#allocation5], %s146
      %s149 = sshll.u32 [#allocation8], 4
      %s150 = int_to_ptr.vmem [resolvable:$true] %s149
      %152 = dma.vmem_to_hbm [thread:$0]  %s150, 128, %s3, [#allocation5]
    $region33: #{tpu_custom_call.1} parent=1 // pred_fallthru
      _
    // Predicated region
    $region34: #{tpu_custom_call.1} parent=1 // pred_check
      _
    $region35: #{tpu_custom_call.1} parent=1 // pred_check_branch
      %154 = sbr.rel (0) target = $region37
    $region36: #{tpu_custom_call.1} parent=1 // pred_region
      %155 = dma.done [#allocation5], 128
    $region37: #{tpu_custom_call.1} parent=1 // pred_fallthru
      _
    %156 = vsyncpa [#allocation4], 1
    %157 = vsyncpa [#allocation7], 1
    %158 = vsyncpa [#allocation5], 1

</llo_original>
